<compile_context>
chip_gen: v7x
topology: tpu7x:2x2x1
jax: 0.10.0
libtpu: 0.0.40
codegen_flags: <defaults>
</compile_context>

<pallas_src>
import numpy as np
import jax
import jax.numpy as jnp
from jax.experimental import pallas as pl
from jax.experimental.pallas import tpu as pltpu


def _tree_sum(terms):
    """Pairwise (tree) summation: same op count, ~log-depth dependent-add chain."""
    terms = list(terms)
    while len(terms) > 1:
        nxt = [terms[i] + terms[i + 1] for i in range(0, len(terms) - 1, 2)]
        if len(terms) % 2:
            nxt.append(terms[-1])
        terms = nxt
    return terms[0]


def _valid_conv(planes, w, b, relu_out):
    """VALID conv over a list of per-channel 2-D planes.

    w (c_out,c_in,k,k) / b (c_out,) are host numpy arrays, so every weight becomes a
    scalar immediate in the trace.  Shifted windows are hoisted out of the oc loop and
    reused for every output channel; products are tree-summed and the bias added last.
    """
    c_out, c_in, k, _ = w.shape
    h = planes[0].shape[0] - k + 1
    ww = planes[0].shape[1] - k + 1
    wins = [planes[ic][kh:kh + h, kw:kw + ww]
            for ic in range(c_in) for kh in range(k) for kw in range(k)]
    outs = []
    for oc in range(c_out):
        wflat = w[oc].reshape(-1)   # (c_in*k*k,) -- same (ic, kh, kw) order as `wins`
        acc = _tree_sum([wins[i] * float(wflat[i]) for i in range(len(wins))])
        acc = acc + float(b[oc])
        outs.append(jnp.maximum(acc, 0.0) if relu_out else acc)
    return outs


def make_multiple_conv_forward(w1, b1, w2, b2, w3, b3, w4, b4, w5, b5):
    """Builds a jitted forward: (1,1,4,4) f32 NCHW -> (2,2,1,1) f32 NCHW.

    The parameters are fixed for this compiled model instance and baked in as
    trace-time constants (per the performance review)."""
    W1, W2, W3, W4, W5 = (np.asarray(a, np.float32) for a in (w1, w2, w3, w4, w5))
    B1, B2, B3, B4, B5 = (np.asarray(a, np.float32) for a in (b1, b2, b3, b4, b5))

    def kernel(x_ref, o_ref):
        x = x_ref[0, 0, :, :]                                     # (4,4) plane; N = C_in = 1

        # Branch 1: conv_1 (1->2,k2) -> relu -> conv_2 (2->3,k2).  conv_2's output only
        # feeds conv_5 through a relu, so the relu is fused here (relu(concat)=concat(relu)).
        x1 = _valid_conv(_valid_conv([x], W1, B1, True), W2, B2, True)   # 3 planes (2,2)
        # Branch 2: conv_3 (1->2,k3) -> relu -> conv_4 (2->3,k1); relu fused likewise.
        x2 = _valid_conv(_valid_conv([x], W3, B3, True), W4, B4, True)   # 3 planes (2,2)

        # torch.concat([x_1, x_2]) concatenates along the BATCH dim.  Fuse both batch
        # elements into a single conv_5 pass: stack per-channel planes along sublanes
        # (rows 0-1 = batch 0, rows 2-3 = batch 1).  With k=2 over the (4,2) stack the
        # valid output rows are 0 (batch 0) and 2 (batch 1); row 1 is discarded.
        stacked = [jnp.concatenate([p1, p2], axis=0) for p1, p2 in zip(x1, x2)]  # 3 x (4,2)
        wins5 = [stacked[ic][kh:kh + 3, kw:kw + 1]                               # 12 x (3,1)
                 for ic in range(3) for kh in range(2) for kw in range(2)]
        cols = []
        for oc in range(2):
            wflat = W5[oc].reshape(-1)
            acc = _tree_sum([wins5[i] * float(wflat[i]) for i in range(12)])
            cols.append(acc + float(B5[oc]))                       # (3,1)
        res = jnp.concatenate(cols, axis=1)                        # (3,2): lanes = out channels

        # Two direct row stores of the valid batch rows (store slot has slack; no
        # (2,2)-building sublane concat needed).
        o_ref[0:1, :] = res[0:1, :]
        o_ref[1:2, :] = res[2:3, :]

    conv_call = pl.pallas_call(
        kernel,
        out_shape=jax.ShapeDtypeStruct((2, 2), jnp.float32),       # rows = batch, lanes = C_out
        in_specs=[pl.BlockSpec(memory_space=pltpu.MemorySpace.VMEM)],
        out_specs=pl.BlockSpec(memory_space=pltpu.MemorySpace.VMEM),
        # Tiny kernel: tell XLA's scheduler it is negligible.
        cost_estimate=pl.CostEstimate(flops=700, transcendentals=0, bytes_accessed=80),
    )

    @jax.jit
    def forward(x_nchw):
        out = conv_call(x_nchw)             # (2,2)
        return out[:, :, None, None]        # metadata-only expand-dims -> (2,2,1,1) NCHW

    return forward


if __name__ == "__main__":
    key = jax.random.PRNGKey(0)
    ks = jax.random.split(key, 11)
    # Deterministic parameters matching the module's shapes (randn-initialized).
    w1 = jax.random.normal(ks[0], (2, 1, 2, 2), jnp.float32)
    b1 = jax.random.normal(ks[1], (2,), jnp.float32)
    w2 = jax.random.normal(ks[2], (3, 2, 2, 2), jnp.float32)
    b2 = jax.random.normal(ks[3], (3,), jnp.float32)
    w3 = jax.random.normal(ks[4], (2, 1, 3, 3), jnp.float32)
    b3 = jax.random.normal(ks[5], (2,), jnp.float32)
    w4 = jax.random.normal(ks[6], (3, 2, 1, 1), jnp.float32)
    b4 = jax.random.normal(ks[7], (3,), jnp.float32)
    w5 = jax.random.normal(ks[8], (2, 3, 2, 2), jnp.float32)
    b5 = jax.random.normal(ks[9], (2,), jnp.float32)
    # Deterministic input at the module's INPUT_SIZE = [1, 1, 4, 4].
    x = jax.random.normal(ks[10], (1, 1, 4, 4), jnp.float32)

    forward = make_multiple_conv_forward(w1, b1, w2, b2, w3, b3, w4, b4, w5, b5)
    y = jax.block_until_ready(forward(x))

    # Pure-JAX reference of the PyTorch forward.
    def conv(inp, w, b):
        out = jax.lax.conv_general_dilated(
            inp, w, window_strides=(1, 1), padding="VALID",
            dimension_numbers=("NCHW", "OIHW", "NCHW"))
        return out + b[None, :, None, None]

    x_1 = conv(jax.nn.relu(conv(x, w1, b1)), w2, b2)                 # (1,3,2,2)
    x_2 = conv(jax.nn.relu(conv(x, w3, b3)), w4, b4)                 # (1,3,2,2)
    x_1_2 = jnp.concatenate([x_1, x_2], axis=0)                      # batch-dim concat
    ref = conv(jax.nn.relu(x_1_2), w5, b5)                           # (2,2,1,1)

    assert y.shape == (2, 2, 1, 1), y.shape
    assert jnp.allclose(y, ref, atol=1e-4, rtol=1e-5), (y, ref)
    print("KERNEL_OK")
</pallas_src>

<mosaic_0001>
module attributes {stable_mosaic.version = 11 : i64} {
  func.func @kernel(%arg0: memref<1x1x4x4xf32, #tpu.memory_space<vmem>>, %arg1: memref<2x2xf32, #tpu.memory_space<vmem>>) attributes {dimension_semantics = [], scalar_prefetch = 0 : i64, scratch_operands = 0 : i64, tpu.core_type = #tpu.core_type<tc>} {
    %c0 = arith.constant 0 : index
    %c0_0 = arith.constant 0 : index
    %c0_1 = arith.constant 0 : index
    %c0_2 = arith.constant 0 : index
    %0 = vector.load %arg0[%c0, %c0_0, %c0_1, %c0_2] : memref<1x1x4x4xf32, #tpu.memory_space<vmem>>, vector<1x1x4x4xf32>
    %1 = vector.shape_cast %0 : vector<1x1x4x4xf32> to vector<4x4xf32>
    %2 = vector.extract_strided_slice %1 {offsets = [0, 0], sizes = [3, 3], strides = [1, 1]} : vector<4x4xf32> to vector<3x3xf32>
    %3 = vector.extract_strided_slice %1 {offsets = [0, 1], sizes = [3, 3], strides = [1, 1]} : vector<4x4xf32> to vector<3x3xf32>
    %4 = vector.extract_strided_slice %1 {offsets = [1, 0], sizes = [3, 3], strides = [1, 1]} : vector<4x4xf32> to vector<3x3xf32>
    %5 = vector.extract_strided_slice %1 {offsets = [1, 1], sizes = [3, 3], strides = [1, 1]} : vector<4x4xf32> to vector<3x3xf32>
    %cst = arith.constant 1.00401425 : f32
    %6 = vector.broadcast %cst : f32 to vector<3x3xf32>
    %7 = arith.mulf %2, %6 : vector<3x3xf32>
    %cst_3 = arith.constant -0.906337201 : f32
    %8 = vector.broadcast %cst_3 : f32 to vector<3x3xf32>
    %9 = arith.mulf %3, %8 : vector<3x3xf32>
    %cst_4 = arith.constant -0.748172223 : f32
    %10 = vector.broadcast %cst_4 : f32 to vector<3x3xf32>
    %11 = arith.mulf %4, %10 : vector<3x3xf32>
    %cst_5 = arith.constant -1.17136693 : f32
    %12 = vector.broadcast %cst_5 : f32 to vector<3x3xf32>
    %13 = arith.mulf %5, %12 : vector<3x3xf32>
    %14 = arith.addf %7, %9 : vector<3x3xf32>
    %15 = arith.addf %11, %13 : vector<3x3xf32>
    %16 = arith.addf %14, %15 : vector<3x3xf32>
    %cst_6 = arith.constant -2.44245577 : f32
    %17 = vector.broadcast %cst_6 : f32 to vector<3x3xf32>
    %18 = arith.addf %16, %17 : vector<3x3xf32>
    %cst_7 = arith.constant 0.000000e+00 : f32
    %19 = vector.broadcast %cst_7 : f32 to vector<3x3xf32>
    %20 = arith.maximumf %18, %19 : vector<3x3xf32>
    %cst_8 = arith.constant -0.871232807 : f32
    %21 = vector.broadcast %cst_8 : f32 to vector<3x3xf32>
    %22 = arith.mulf %2, %21 : vector<3x3xf32>
    %cst_9 = arith.constant 0.5888381 : f32
    %23 = vector.broadcast %cst_9 : f32 to vector<3x3xf32>
    %24 = arith.mulf %3, %23 : vector<3x3xf32>
    %cst_10 = arith.constant 0.723929941 : f32
    %25 = vector.broadcast %cst_10 : f32 to vector<3x3xf32>
    %26 = arith.mulf %4, %25 : vector<3x3xf32>
    %cst_11 = arith.constant -1.02559817 : f32
    %27 = vector.broadcast %cst_11 : f32 to vector<3x3xf32>
    %28 = arith.mulf %5, %27 : vector<3x3xf32>
    %29 = arith.addf %22, %24 : vector<3x3xf32>
    %30 = arith.addf %26, %28 : vector<3x3xf32>
    %31 = arith.addf %29, %30 : vector<3x3xf32>
    %cst_12 = arith.constant -2.03568053 : f32
    %32 = vector.broadcast %cst_12 : f32 to vector<3x3xf32>
    %33 = arith.addf %31, %32 : vector<3x3xf32>
    %cst_13 = arith.constant 0.000000e+00 : f32
    %34 = vector.broadcast %cst_13 : f32 to vector<3x3xf32>
    %35 = arith.maximumf %33, %34 : vector<3x3xf32>
    %36 = vector.extract_strided_slice %20 {offsets = [0, 0], sizes = [2, 2], strides = [1, 1]} : vector<3x3xf32> to vector<2x2xf32>
    %37 = vector.extract_strided_slice %20 {offsets = [0, 1], sizes = [2, 2], strides = [1, 1]} : vector<3x3xf32> to vector<2x2xf32>
    %38 = vector.extract_strided_slice %20 {offsets = [1, 0], sizes = [2, 2], strides = [1, 1]} : vector<3x3xf32> to vector<2x2xf32>
    %39 = vector.extract_strided_slice %20 {offsets = [1, 1], sizes = [2, 2], strides = [1, 1]} : vector<3x3xf32> to vector<2x2xf32>
    %40 = vector.extract_strided_slice %35 {offsets = [0, 0], sizes = [2, 2], strides = [1, 1]} : vector<3x3xf32> to vector<2x2xf32>
    %41 = vector.extract_strided_slice %35 {offsets = [0, 1], sizes = [2, 2], strides = [1, 1]} : vector<3x3xf32> to vector<2x2xf32>
    %42 = vector.extract_strided_slice %35 {offsets = [1, 0], sizes = [2, 2], strides = [1, 1]} : vector<3x3xf32> to vector<2x2xf32>
    %43 = vector.extract_strided_slice %35 {offsets = [1, 1], sizes = [2, 2], strides = [1, 1]} : vector<3x3xf32> to vector<2x2xf32>
    %cst_14 = arith.constant 1.29563594 : f32
    %44 = vector.broadcast %cst_14 : f32 to vector<2x2xf32>
    %45 = arith.mulf %36, %44 : vector<2x2xf32>
    %cst_15 = arith.constant 1.35501051 : f32
    %46 = vector.broadcast %cst_15 : f32 to vector<2x2xf32>
    %47 = arith.mulf %37, %46 : vector<2x2xf32>
    %cst_16 = arith.constant -0.409605563 : f32
    %48 = vector.broadcast %cst_16 : f32 to vector<2x2xf32>
    %49 = arith.mulf %38, %48 : vector<2x2xf32>
    %cst_17 = arith.constant -0.771885454 : f32
    %50 = vector.broadcast %cst_17 : f32 to vector<2x2xf32>
    %51 = arith.mulf %39, %50 : vector<2x2xf32>
    %cst_18 = arith.constant 0.380941719 : f32
    %52 = vector.broadcast %cst_18 : f32 to vector<2x2xf32>
    %53 = arith.mulf %40, %52 : vector<2x2xf32>
    %cst_19 = arith.constant 0.0188891906 : f32
    %54 = vector.broadcast %cst_19 : f32 to vector<2x2xf32>
    %55 = arith.mulf %41, %54 : vector<2x2xf32>
    %cst_20 = arith.constant 0.57455653 : f32
    %56 = vector.broadcast %cst_20 : f32 to vector<2x2xf32>
    %57 = arith.mulf %42, %56 : vector<2x2xf32>
    %cst_21 = arith.constant -0.753278911 : f32
    %58 = vector.broadcast %cst_21 : f32 to vector<2x2xf32>
    %59 = arith.mulf %43, %58 : vector<2x2xf32>
    %60 = arith.addf %45, %47 : vector<2x2xf32>
    %61 = arith.addf %49, %51 : vector<2x2xf32>
    %62 = arith.addf %53, %55 : vector<2x2xf32>
    %63 = arith.addf %57, %59 : vector<2x2xf32>
    %64 = arith.addf %60, %61 : vector<2x2xf32>
    %65 = arith.addf %62, %63 : vector<2x2xf32>
    %66 = arith.addf %64, %65 : vector<2x2xf32>
    %cst_22 = arith.constant -0.621943593 : f32
    %67 = vector.broadcast %cst_22 : f32 to vector<2x2xf32>
    %68 = arith.addf %66, %67 : vector<2x2xf32>
    %cst_23 = arith.constant 0.000000e+00 : f32
    %69 = vector.broadcast %cst_23 : f32 to vector<2x2xf32>
    %70 = arith.maximumf %68, %69 : vector<2x2xf32>
    %cst_24 = arith.constant 0.230166227 : f32
    %71 = vector.broadcast %cst_24 : f32 to vector<2x2xf32>
    %72 = arith.mulf %36, %71 : vector<2x2xf32>
    %cst_25 = arith.constant -1.48934364 : f32
    %73 = vector.broadcast %cst_25 : f32 to vector<2x2xf32>
    %74 = arith.mulf %37, %73 : vector<2x2xf32>
    %cst_26 = arith.constant -0.914319694 : f32
    %75 = vector.broadcast %cst_26 : f32 to vector<2x2xf32>
    %76 = arith.mulf %38, %75 : vector<2x2xf32>
    %cst_27 = arith.constant 1.76612055 : f32
    %77 = vector.broadcast %cst_27 : f32 to vector<2x2xf32>
    %78 = arith.mulf %39, %77 : vector<2x2xf32>
    %cst_28 = arith.constant -0.95966351 : f32
    %79 = vector.broadcast %cst_28 : f32 to vector<2x2xf32>
    %80 = arith.mulf %40, %79 : vector<2x2xf32>
    %cst_29 = arith.constant -0.431319952 : f32
    %81 = vector.broadcast %cst_29 : f32 to vector<2x2xf32>
    %82 = arith.mulf %41, %81 : vector<2x2xf32>
    %cst_30 = arith.constant 0.815238952 : f32
    %83 = vector.broadcast %cst_30 : f32 to vector<2x2xf32>
    %84 = arith.mulf %42, %83 : vector<2x2xf32>
    %cst_31 = arith.constant 1.19967389 : f32
    %85 = vector.broadcast %cst_31 : f32 to vector<2x2xf32>
    %86 = arith.mulf %43, %85 : vector<2x2xf32>
    %87 = arith.addf %72, %74 : vector<2x2xf32>
    %88 = arith.addf %76, %78 : vector<2x2xf32>
    %89 = arith.addf %80, %82 : vector<2x2xf32>
    %90 = arith.addf %84, %86 : vector<2x2xf32>
    %91 = arith.addf %87, %88 : vector<2x2xf32>
    %92 = arith.addf %89, %90 : vector<2x2xf32>
    %93 = arith.addf %91, %92 : vector<2x2xf32>
    %cst_32 = arith.constant 0.624804079 : f32
    %94 = vector.broadcast %cst_32 : f32 to vector<2x2xf32>
    %95 = arith.addf %93, %94 : vector<2x2xf32>
    %cst_33 = arith.constant 0.000000e+00 : f32
    %96 = vector.broadcast %cst_33 : f32 to vector<2x2xf32>
    %97 = arith.maximumf %95, %96 : vector<2x2xf32>
    %cst_34 = arith.constant -0.107764222 : f32
    %98 = vector.broadcast %cst_34 : f32 to vector<2x2xf32>
    %99 = arith.mulf %36, %98 : vector<2x2xf32>
    %cst_35 = arith.constant -0.902676403 : f32
    %100 = vector.broadcast %cst_35 : f32 to vector<2x2xf32>
    %101 = arith.mulf %37, %100 : vector<2x2xf32>
    %cst_36 = arith.constant 1.37596428 : f32
    %102 = vector.broadcast %cst_36 : f32 to vector<2x2xf32>
    %103 = arith.mulf %38, %102 : vector<2x2xf32>
    %cst_37 = arith.constant 0.130110696 : f32
    %104 = vector.broadcast %cst_37 : f32 to vector<2x2xf32>
    %105 = arith.mulf %39, %104 : vector<2x2xf32>
    %cst_38 = arith.constant -5.900460e-01 : f32
    %106 = vector.broadcast %cst_38 : f32 to vector<2x2xf32>
    %107 = arith.mulf %40, %106 : vector<2x2xf32>
    %cst_39 = arith.constant -0.461295515 : f32
    %108 = vector.broadcast %cst_39 : f32 to vector<2x2xf32>
    %109 = arith.mulf %41, %108 : vector<2x2xf32>
    %cst_40 = arith.constant -0.567099929 : f32
    %110 = vector.broadcast %cst_40 : f32 to vector<2x2xf32>
    %111 = arith.mulf %42, %110 : vector<2x2xf32>
    %cst_41 = arith.constant 0.276171923 : f32
    %112 = vector.broadcast %cst_41 : f32 to vector<2x2xf32>
    %113 = arith.mulf %43, %112 : vector<2x2xf32>
    %114 = arith.addf %99, %101 : vector<2x2xf32>
    %115 = arith.addf %103, %105 : vector<2x2xf32>
    %116 = arith.addf %107, %109 : vector<2x2xf32>
    %117 = arith.addf %111, %113 : vector<2x2xf32>
    %118 = arith.addf %114, %115 : vector<2x2xf32>
    %119 = arith.addf %116, %117 : vector<2x2xf32>
    %120 = arith.addf %118, %119 : vector<2x2xf32>
    %cst_42 = arith.constant 1.68207753 : f32
    %121 = vector.broadcast %cst_42 : f32 to vector<2x2xf32>
    %122 = arith.addf %120, %121 : vector<2x2xf32>
    %cst_43 = arith.constant 0.000000e+00 : f32
    %123 = vector.broadcast %cst_43 : f32 to vector<2x2xf32>
    %124 = arith.maximumf %122, %123 : vector<2x2xf32>
    %125 = vector.extract_strided_slice %1 {offsets = [0, 0], sizes = [2, 2], strides = [1, 1]} : vector<4x4xf32> to vector<2x2xf32>
    %126 = vector.extract_strided_slice %1 {offsets = [0, 1], sizes = [2, 2], strides = [1, 1]} : vector<4x4xf32> to vector<2x2xf32>
    %127 = vector.extract_strided_slice %1 {offsets = [0, 2], sizes = [2, 2], strides = [1, 1]} : vector<4x4xf32> to vector<2x2xf32>
    %128 = vector.extract_strided_slice %1 {offsets = [1, 0], sizes = [2, 2], strides = [1, 1]} : vector<4x4xf32> to vector<2x2xf32>
    %129 = vector.extract_strided_slice %1 {offsets = [1, 1], sizes = [2, 2], strides = [1, 1]} : vector<4x4xf32> to vector<2x2xf32>
    %130 = vector.extract_strided_slice %1 {offsets = [1, 2], sizes = [2, 2], strides = [1, 1]} : vector<4x4xf32> to vector<2x2xf32>
    %131 = vector.extract_strided_slice %1 {offsets = [2, 0], sizes = [2, 2], strides = [1, 1]} : vector<4x4xf32> to vector<2x2xf32>
    %132 = vector.extract_strided_slice %1 {offsets = [2, 1], sizes = [2, 2], strides = [1, 1]} : vector<4x4xf32> to vector<2x2xf32>
    %133 = vector.extract_strided_slice %1 {offsets = [2, 2], sizes = [2, 2], strides = [1, 1]} : vector<4x4xf32> to vector<2x2xf32>
    %cst_44 = arith.constant -1.02088535 : f32
    %134 = vector.broadcast %cst_44 : f32 to vector<2x2xf32>
    %135 = arith.mulf %125, %134 : vector<2x2xf32>
    %cst_45 = arith.constant 0.60980767 : f32
    %136 = vector.broadcast %cst_45 : f32 to vector<2x2xf32>
    %137 = arith.mulf %126, %136 : vector<2x2xf32>
    %cst_46 = arith.constant -1.29416931 : f32
    %138 = vector.broadcast %cst_46 : f32 to vector<2x2xf32>
    %139 = arith.mulf %127, %138 : vector<2x2xf32>
    %cst_47 = arith.constant -0.121447206 : f32
    %140 = vector.broadcast %cst_47 : f32 to vector<2x2xf32>
    %141 = arith.mulf %128, %140 : vector<2x2xf32>
    %cst_48 = arith.constant -1.34854805 : f32
    %142 = vector.broadcast %cst_48 : f32 to vector<2x2xf32>
    %143 = arith.mulf %129, %142 : vector<2x2xf32>
    %cst_49 = arith.constant -0.693677664 : f32
    %144 = vector.broadcast %cst_49 : f32 to vector<2x2xf32>
    %145 = arith.mulf %130, %144 : vector<2x2xf32>
    %cst_50 = arith.constant 0.79971975 : f32
    %146 = vector.broadcast %cst_50 : f32 to vector<2x2xf32>
    %147 = arith.mulf %131, %146 : vector<2x2xf32>
    %cst_51 = arith.constant 1.69821584 : f32
    %148 = vector.broadcast %cst_51 : f32 to vector<2x2xf32>
    %149 = arith.mulf %132, %148 : vector<2x2xf32>
    %cst_52 = arith.constant 0.420725763 : f32
    %150 = vector.broadcast %cst_52 : f32 to vector<2x2xf32>
    %151 = arith.mulf %133, %150 : vector<2x2xf32>
    %152 = arith.addf %135, %137 : vector<2x2xf32>
    %153 = arith.addf %139, %141 : vector<2x2xf32>
    %154 = arith.addf %143, %145 : vector<2x2xf32>
    %155 = arith.addf %147, %149 : vector<2x2xf32>
    %156 = arith.addf %152, %153 : vector<2x2xf32>
    %157 = arith.addf %154, %155 : vector<2x2xf32>
    %158 = arith.addf %156, %157 : vector<2x2xf32>
    %159 = arith.addf %158, %151 : vector<2x2xf32>
    %cst_53 = arith.constant 0.637377143 : f32
    %160 = vector.broadcast %cst_53 : f32 to vector<2x2xf32>
    %161 = arith.addf %159, %160 : vector<2x2xf32>
    %cst_54 = arith.constant 0.000000e+00 : f32
    %162 = vector.broadcast %cst_54 : f32 to vector<2x2xf32>
    %163 = arith.maximumf %161, %162 : vector<2x2xf32>
    %cst_55 = arith.constant -0.267408907 : f32
    %164 = vector.broadcast %cst_55 : f32 to vector<2x2xf32>
    %165 = arith.mulf %125, %164 : vector<2x2xf32>
    %cst_56 = arith.constant -0.689474702 : f32
    %166 = vector.broadcast %cst_56 : f32 to vector<2x2xf32>
    %167 = arith.mulf %126, %166 : vector<2x2xf32>
    %cst_57 = arith.constant -1.38315547 : f32
    %168 = vector.broadcast %cst_57 : f32 to vector<2x2xf32>
    %169 = arith.mulf %127, %168 : vector<2x2xf32>
    %cst_58 = arith.constant 0.742861092 : f32
    %170 = vector.broadcast %cst_58 : f32 to vector<2x2xf32>
    %171 = arith.mulf %128, %170 : vector<2x2xf32>
    %cst_59 = arith.constant -0.442812562 : f32
    %172 = vector.broadcast %cst_59 : f32 to vector<2x2xf32>
    %173 = arith.mulf %129, %172 : vector<2x2xf32>
    %cst_60 = arith.constant -0.930827379 : f32
    %174 = vector.broadcast %cst_60 : f32 to vector<2x2xf32>
    %175 = arith.mulf %130, %174 : vector<2x2xf32>
    %cst_61 = arith.constant 1.36428881 : f32
    %176 = vector.broadcast %cst_61 : f32 to vector<2x2xf32>
    %177 = arith.mulf %131, %176 : vector<2x2xf32>
    %cst_62 = arith.constant 1.16915798 : f32
    %178 = vector.broadcast %cst_62 : f32 to vector<2x2xf32>
    %179 = arith.mulf %132, %178 : vector<2x2xf32>
    %cst_63 = arith.constant 0.296838492 : f32
    %180 = vector.broadcast %cst_63 : f32 to vector<2x2xf32>
    %181 = arith.mulf %133, %180 : vector<2x2xf32>
    %182 = arith.addf %165, %167 : vector<2x2xf32>
    %183 = arith.addf %169, %171 : vector<2x2xf32>
    %184 = arith.addf %173, %175 : vector<2x2xf32>
    %185 = arith.addf %177, %179 : vector<2x2xf32>
    %186 = arith.addf %182, %183 : vector<2x2xf32>
    %187 = arith.addf %184, %185 : vector<2x2xf32>
    %188 = arith.addf %186, %187 : vector<2x2xf32>
    %189 = arith.addf %188, %181 : vector<2x2xf32>
    %cst_64 = arith.constant 0.319591552 : f32
    %190 = vector.broadcast %cst_64 : f32 to vector<2x2xf32>
    %191 = arith.addf %189, %190 : vector<2x2xf32>
    %cst_65 = arith.constant 0.000000e+00 : f32
    %192 = vector.broadcast %cst_65 : f32 to vector<2x2xf32>
    %193 = arith.maximumf %191, %192 : vector<2x2xf32>
    %cst_66 = arith.constant 1.16349936 : f32
    %194 = vector.broadcast %cst_66 : f32 to vector<2x2xf32>
    %195 = arith.mulf %163, %194 : vector<2x2xf32>
    %cst_67 = arith.constant -0.970573961 : f32
    %196 = vector.broadcast %cst_67 : f32 to vector<2x2xf32>
    %197 = arith.mulf %193, %196 : vector<2x2xf32>
    %198 = arith.addf %195, %197 : vector<2x2xf32>
    %cst_68 = arith.constant -0.0625904724 : f32
    %199 = vector.broadcast %cst_68 : f32 to vector<2x2xf32>
    %200 = arith.addf %198, %199 : vector<2x2xf32>
    %cst_69 = arith.constant 0.000000e+00 : f32
    %201 = vector.broadcast %cst_69 : f32 to vector<2x2xf32>
    %202 = arith.maximumf %200, %201 : vector<2x2xf32>
    %cst_70 = arith.constant 0.257543117 : f32
    %203 = vector.broadcast %cst_70 : f32 to vector<2x2xf32>
    %204 = arith.mulf %163, %203 : vector<2x2xf32>
    %cst_71 = arith.constant 0.535083473 : f32
    %205 = vector.broadcast %cst_71 : f32 to vector<2x2xf32>
    %206 = arith.mulf %193, %205 : vector<2x2xf32>
    %207 = arith.addf %204, %206 : vector<2x2xf32>
    %cst_72 = arith.constant -1.46144092 : f32
    %208 = vector.broadcast %cst_72 : f32 to vector<2x2xf32>
    %209 = arith.addf %207, %208 : vector<2x2xf32>
    %cst_73 = arith.constant 0.000000e+00 : f32
    %210 = vector.broadcast %cst_73 : f32 to vector<2x2xf32>
    %211 = arith.maximumf %209, %210 : vector<2x2xf32>
    %cst_74 = arith.constant 0.633619129 : f32
    %212 = vector.broadcast %cst_74 : f32 to vector<2x2xf32>
    %213 = arith.mulf %163, %212 : vector<2x2xf32>
    %cst_75 = arith.constant -0.602170348 : f32
    %214 = vector.broadcast %cst_75 : f32 to vector<2x2xf32>
    %215 = arith.mulf %193, %214 : vector<2x2xf32>
    %216 = arith.addf %213, %215 : vector<2x2xf32>
    %cst_76 = arith.constant -0.893747091 : f32
    %217 = vector.broadcast %cst_76 : f32 to vector<2x2xf32>
    %218 = arith.addf %216, %217 : vector<2x2xf32>
    %cst_77 = arith.constant 0.000000e+00 : f32
    %219 = vector.broadcast %cst_77 : f32 to vector<2x2xf32>
    %220 = arith.maximumf %218, %219 : vector<2x2xf32>
    %221 = tpu.concatenate %70, %202 in 0 : vector<2x2xf32>, vector<2x2xf32> -> vector<4x2xf32>
    %222 = tpu.concatenate %97, %211 in 0 : vector<2x2xf32>, vector<2x2xf32> -> vector<4x2xf32>
    %223 = tpu.concatenate %124, %220 in 0 : vector<2x2xf32>, vector<2x2xf32> -> vector<4x2xf32>
    %224 = vector.extract_strided_slice %221 {offsets = [0, 0], sizes = [3, 1], strides = [1, 1]} : vector<4x2xf32> to vector<3x1xf32>
    %225 = vector.extract_strided_slice %221 {offsets = [0, 1], sizes = [3, 1], strides = [1, 1]} : vector<4x2xf32> to vector<3x1xf32>
    %226 = vector.extract_strided_slice %221 {offsets = [1, 0], sizes = [3, 1], strides = [1, 1]} : vector<4x2xf32> to vector<3x1xf32>
    %227 = vector.extract_strided_slice %221 {offsets = [1, 1], sizes = [3, 1], strides = [1, 1]} : vector<4x2xf32> to vector<3x1xf32>
    %228 = vector.extract_strided_slice %222 {offsets = [0, 0], sizes = [3, 1], strides = [1, 1]} : vector<4x2xf32> to vector<3x1xf32>
    %229 = vector.extract_strided_slice %222 {offsets = [0, 1], sizes = [3, 1], strides = [1, 1]} : vector<4x2xf32> to vector<3x1xf32>
    %230 = vector.extract_strided_slice %222 {offsets = [1, 0], sizes = [3, 1], strides = [1, 1]} : vector<4x2xf32> to vector<3x1xf32>
    %231 = vector.extract_strided_slice %222 {offsets = [1, 1], sizes = [3, 1], strides = [1, 1]} : vector<4x2xf32> to vector<3x1xf32>
    %232 = vector.extract_strided_slice %223 {offsets = [0, 0], sizes = [3, 1], strides = [1, 1]} : vector<4x2xf32> to vector<3x1xf32>
    %233 = vector.extract_strided_slice %223 {offsets = [0, 1], sizes = [3, 1], strides = [1, 1]} : vector<4x2xf32> to vector<3x1xf32>
    %234 = vector.extract_strided_slice %223 {offsets = [1, 0], sizes = [3, 1], strides = [1, 1]} : vector<4x2xf32> to vector<3x1xf32>
    %235 = vector.extract_strided_slice %223 {offsets = [1, 1], sizes = [3, 1], strides = [1, 1]} : vector<4x2xf32> to vector<3x1xf32>
    %cst_78 = arith.constant -0.645857512 : f32
    %236 = vector.broadcast %cst_78 : f32 to vector<3x1xf32>
    %237 = arith.mulf %224, %236 : vector<3x1xf32>
    %cst_79 = arith.constant -1.52699125 : f32
    %238 = vector.broadcast %cst_79 : f32 to vector<3x1xf32>
    %239 = arith.mulf %225, %238 : vector<3x1xf32>
    %cst_80 = arith.constant 0.638976752 : f32
    %240 = vector.broadcast %cst_80 : f32 to vector<3x1xf32>
    %241 = arith.mulf %226, %240 : vector<3x1xf32>
    %cst_81 = arith.constant -2.89420629 : f32
    %242 = vector.broadcast %cst_81 : f32 to vector<3x1xf32>
    %243 = arith.mulf %227, %242 : vector<3x1xf32>
    %cst_82 = arith.constant -1.28082013 : f32
    %244 = vector.broadcast %cst_82 : f32 to vector<3x1xf32>
    %245 = arith.mulf %228, %244 : vector<3x1xf32>
    %cst_83 = arith.constant -0.379941523 : f32
    %246 = vector.broadcast %cst_83 : f32 to vector<3x1xf32>
    %247 = arith.mulf %229, %246 : vector<3x1xf32>
    %cst_84 = arith.constant 0.844981253 : f32
    %248 = vector.broadcast %cst_84 : f32 to vector<3x1xf32>
    %249 = arith.mulf %230, %248 : vector<3x1xf32>
    %cst_85 = arith.constant 0.143996492 : f32
    %250 = vector.broadcast %cst_85 : f32 to vector<3x1xf32>
    %251 = arith.mulf %231, %250 : vector<3x1xf32>
    %cst_86 = arith.constant -0.207790509 : f32
    %252 = vector.broadcast %cst_86 : f32 to vector<3x1xf32>
    %253 = arith.mulf %232, %252 : vector<3x1xf32>
    %cst_87 = arith.constant -0.387447953 : f32
    %254 = vector.broadcast %cst_87 : f32 to vector<3x1xf32>
    %255 = arith.mulf %233, %254 : vector<3x1xf32>
    %cst_88 = arith.constant -0.961639702 : f32
    %256 = vector.broadcast %cst_88 : f32 to vector<3x1xf32>
    %257 = arith.mulf %234, %256 : vector<3x1xf32>
    %cst_89 = arith.constant -0.715217769 : f32
    %258 = vector.broadcast %cst_89 : f32 to vector<3x1xf32>
    %259 = arith.mulf %235, %258 : vector<3x1xf32>
    %260 = arith.addf %237, %239 : vector<3x1xf32>
    %261 = arith.addf %241, %243 : vector<3x1xf32>
    %262 = arith.addf %245, %247 : vector<3x1xf32>
    %263 = arith.addf %249, %251 : vector<3x1xf32>
    %264 = arith.addf %253, %255 : vector<3x1xf32>
    %265 = arith.addf %257, %259 : vector<3x1xf32>
    %266 = arith.addf %260, %261 : vector<3x1xf32>
    %267 = arith.addf %262, %263 : vector<3x1xf32>
    %268 = arith.addf %264, %265 : vector<3x1xf32>
    %269 = arith.addf %266, %267 : vector<3x1xf32>
    %270 = arith.addf %269, %268 : vector<3x1xf32>
    %cst_90 = arith.constant 0.0720986202 : f32
    %271 = vector.broadcast %cst_90 : f32 to vector<3x1xf32>
    %272 = arith.addf %270, %271 : vector<3x1xf32>
    %cst_91 = arith.constant 2.08186936 : f32
    %273 = vector.broadcast %cst_91 : f32 to vector<3x1xf32>
    %274 = arith.mulf %224, %273 : vector<3x1xf32>
    %cst_92 = arith.constant -0.261184931 : f32
    %275 = vector.broadcast %cst_92 : f32 to vector<3x1xf32>
    %276 = arith.mulf %225, %275 : vector<3x1xf32>
    %cst_93 = arith.constant -0.562666059 : f32
    %277 = vector.broadcast %cst_93 : f32 to vector<3x1xf32>
    %278 = arith.mulf %226, %277 : vector<3x1xf32>
    %cst_94 = arith.constant 1.18991506 : f32
    %279 = vector.broadcast %cst_94 : f32 to vector<3x1xf32>
    %280 = arith.mulf %227, %279 : vector<3x1xf32>
    %cst_95 = arith.constant -0.758857429 : f32
    %281 = vector.broadcast %cst_95 : f32 to vector<3x1xf32>
    %282 = arith.mulf %228, %281 : vector<3x1xf32>
    %cst_96 = arith.constant -0.499283791 : f32
    %283 = vector.broadcast %cst_96 : f32 to vector<3x1xf32>
    %284 = arith.mulf %229, %283 : vector<3x1xf32>
    %cst_97 = arith.constant -0.597031832 : f32
    %285 = vector.broadcast %cst_97 : f32 to vector<3x1xf32>
    %286 = arith.mulf %230, %285 : vector<3x1xf32>
    %cst_98 = arith.constant -0.85303837 : f32
    %287 = vector.broadcast %cst_98 : f32 to vector<3x1xf32>
    %288 = arith.mulf %231, %287 : vector<3x1xf32>
    %cst_99 = arith.constant 0.255164772 : f32
    %289 = vector.broadcast %cst_99 : f32 to vector<3x1xf32>
    %290 = arith.mulf %232, %289 : vector<3x1xf32>
    %cst_100 = arith.constant 0.408487469 : f32
    %291 = vector.broadcast %cst_100 : f32 to vector<3x1xf32>
    %292 = arith.mulf %233, %291 : vector<3x1xf32>
    %cst_101 = arith.constant -0.126277983 : f32
    %293 = vector.broadcast %cst_101 : f32 to vector<3x1xf32>
    %294 = arith.mulf %234, %293 : vector<3x1xf32>
    %cst_102 = arith.constant -0.0348154232 : f32
    %295 = vector.broadcast %cst_102 : f32 to vector<3x1xf32>
    %296 = arith.mulf %235, %295 : vector<3x1xf32>
    %297 = arith.addf %274, %276 : vector<3x1xf32>
    %298 = arith.addf %278, %280 : vector<3x1xf32>
    %299 = arith.addf %282, %284 : vector<3x1xf32>
    %300 = arith.addf %286, %288 : vector<3x1xf32>
    %301 = arith.addf %290, %292 : vector<3x1xf32>
    %302 = arith.addf %294, %296 : vector<3x1xf32>
    %303 = arith.addf %297, %298 : vector<3x1xf32>
    %304 = arith.addf %299, %300 : vector<3x1xf32>
    %305 = arith.addf %301, %302 : vector<3x1xf32>
    %306 = arith.addf %303, %304 : vector<3x1xf32>
    %307 = arith.addf %306, %305 : vector<3x1xf32>
    %cst_103 = arith.constant -0.295179665 : f32
    %308 = vector.broadcast %cst_103 : f32 to vector<3x1xf32>
    %309 = arith.addf %307, %308 : vector<3x1xf32>
    %310 = tpu.concatenate %272, %309 in 1 : vector<3x1xf32>, vector<3x1xf32> -> vector<3x2xf32>
    %311 = vector.extract_strided_slice %310 {offsets = [0, 0], sizes = [1, 2], strides = [1, 1]} : vector<3x2xf32> to vector<1x2xf32>
    %c0_104 = arith.constant 0 : index
    %c0_105 = arith.constant 0 : index
    %312 = vector.load %arg1[%c0_104, %c0_105] : memref<2x2xf32, #tpu.memory_space<vmem>>, vector<1x2xf32>
    tpu.vector_store %arg1[%c0_104, %c0_105], %311 {strides = array<i32>} : memref<2x2xf32, #tpu.memory_space<vmem>>, vector<1x2xf32>,
    %313 = vector.extract_strided_slice %310 {offsets = [2, 0], sizes = [1, 2], strides = [1, 1]} : vector<3x2xf32> to vector<1x2xf32>
    %c1 = arith.constant 1 : index
    %c0_106 = arith.constant 0 : index
    %314 = vector.load %arg1[%c1, %c0_106] : memref<2x2xf32, #tpu.memory_space<vmem>>, vector<1x2xf32>
    tpu.vector_store %arg1[%c1, %c0_106], %313 {strides = array<i32>} : memref<2x2xf32, #tpu.memory_space<vmem>>, vector<1x2xf32>,
    return
  }
}

</mosaic_0001>

<llo_original>
// kernel: forward.1
$region0: #{forward.1}
  #allocation0 [shape = 'u32[]', space=smem, size = 0x4, offset = 0x4, fixed_abs, tag = 'smem constant byte address 0x4 - core index']
  #allocation1 [shape = 'u32[144,128]{1,0:T(1,128)}', space=vmem, size = 0x12000, scoped, tag = 'internal scratch']
  %s0 = inlined_call_operand.hbm [shape: f32[1,1,4,4], index: 0, kind: input, shape index: {}]
  %s1 = inlined_call_operand.hbm [shape: f32[2,2], index: 1, kind: output, shape index: {}]
  %s2 = sld [smem:[#allocation0]]
  $region18: #{forward.1} parent=0
    _
  %s4 = ssub.s32 1, %s2
  %s5 = scalar_select 0, %s4, %s2
  $region1: #{forward.1} parent=0
    #allocation2 [shape = 'u8[2048]{0}', space=vmem, size = 0x800, scoped, tag = 'input window, operand 0, single buffered']
    #allocation3 [shape = 's32[1]{0}', space=sflag, size = 0x4, scoped, tag = 'scoped memory for forward.1']
    #allocation4 [shape = 's32[1]{0}', space=sflag, size = 0x4, scoped, tag = 'scoped memory for forward.1']
    #allocation5 [shape = 'u8[1024]{0}', space=vmem, size = 0x400, scoped, tag = 'output window, operand 0, single buffered']
    %6 = vsyncpa [#allocation3], 0
    %7 = vsyncpa [#allocation4], 0
    // Predicated region
    $region2: #{forward.1} parent=1 // pred_check
      _
    $region3: #{forward.1} parent=1 // pred_check_branch
      %9 = sbr.rel (0) target = $region5
    $region4: #{forward.1} parent=1 // pred_region
      %s11 = ssub.s32 64, 64
      %12 = vsyncadd [#allocation3], %s11
      %s14 = sshll.u32 [#allocation2], 4
      %s15 = int_to_ptr.vmem [resolvable:$true] %s14
      %17 = dma.hbm_to_vmem [thread:$0]  %s0, 64, %s15, [#allocation3]
    $region5: #{forward.1} parent=1 // pred_fallthru
      _
    // Predicated region
    $region6: #{forward.1} parent=1 // pred_check
      _
    $region7: #{forward.1} parent=1 // pred_check_branch
      %19 = sbr.rel (0) target = $region9
    $region8: #{forward.1} parent=1 // pred_region
      %20 = dma.done [#allocation3], 64
    $region9: #{forward.1} parent=1 // pred_fallthru
      _
    %v21 = vld [vmem:[#allocation2] sm:$0xf]
    %v22 = vmul.f32 %v21, 1.0040143
    %v23 = vmul.f32 %v21, -0.9063372
    %v24 = vmul.f32 %v21, -0.7481722
    %v25 = vmul.f32 %v21, -1.1713669
    %27 = vrot.lane.b32.xlu0 %v23, 127
    %v28 = vpop.permute.xlu0 %27
    %v30 = vadd.f32 %v22, %v28
    %32 = vrot.lane.b32.xlu0 %v25, 127
    %v33 = vpop.permute.xlu0 %32
    %v35 = vadd.f32 %v24, %v33
    %v37 = vrot.slane %v35, 1
    %v39 = vadd.f32 %v30, %v37
    %v40 = vadd.f32 %v39, -2.4424558
    %v41 = vmax.f32 %v40, 0.0
    %v42 = vmul.f32 %v21, -0.8712328
    %v43 = vmul.f32 %v21, 0.5888381
    %v44 = vmul.f32 %v21, 0.72392994
    %v45 = vmul.f32 %v21, -1.0255982
    %47 = vrot.lane.b32.xlu0 %v43, 127
    %v48 = vpop.permute.xlu0 %47
    %v50 = vadd.f32 %v42, %v48
    %52 = vrot.lane.b32.xlu0 %v45, 127
    %v53 = vpop.permute.xlu0 %52
    %v55 = vadd.f32 %v44, %v53
    %v57 = vrot.slane %v55, 1
    %v59 = vadd.f32 %v50, %v57
    %v60 = vadd.f32 %v59, -2.0356805
    %v61 = vmax.f32 %v60, 0.0
    %v62 = vmul.f32 %v41, 1.2956359
    %v63 = vmul.f32 %v41, 1.3550105
    %v64 = vmul.f32 %v41, -0.40960556
    %v65 = vmul.f32 %v41, -0.77188545
    %v66 = vmul.f32 %v61, 0.38094172
    %v67 = vmul.f32 %v61, 0.01888919
    %v68 = vmul.f32 %v61, 0.5745565
    %v69 = vmul.f32 %v61, -0.7532789
    %71 = vrot.lane.b32.xlu0 %v63, 127
    %v72 = vpop.permute.xlu0 %71
    %v74 = vadd.f32 %v62, %v72
    %76 = vrot.lane.b32.xlu0 %v65, 127
    %v77 = vpop.permute.xlu0 %76
    %v79 = vadd.f32 %v64, %v77
    %81 = vrot.lane.b32.xlu0 %v67, 127
    %v82 = vpop.permute.xlu0 %81
    %v84 = vadd.f32 %v66, %v82
    %86 = vrot.lane.b32.xlu0 %v69, 127
    %v87 = vpop.permute.xlu0 %86
    %v89 = vadd.f32 %v68, %v87
    %v91 = vrot.slane %v79, 1
    %v93 = vadd.f32 %v74, %v91
    %v95 = vrot.slane %v89, 1
    %v97 = vadd.f32 %v84, %v95
    %v98 = vadd.f32 %v93, %v97
    %v99 = vadd.f32 %v98, -0.6219436
    %v100 = vmax.f32 %v99, 0.0
    %v101 = vmul.f32 %v41, 0.23016623
    %v102 = vmul.f32 %v41, -1.4893436
    %v103 = vmul.f32 %v41, -0.9143197
    %v104 = vmul.f32 %v41, 1.7661206
    %v105 = vmul.f32 %v61, -0.9596635
    %v106 = vmul.f32 %v61, -0.43131995
    %v107 = vmul.f32 %v61, 0.81523895
    %v108 = vmul.f32 %v61, 1.1996739
    %110 = vrot.lane.b32.xlu0 %v102, 127
    %v111 = vpop.permute.xlu0 %110
    %v113 = vadd.f32 %v101, %v111
    %115 = vrot.lane.b32.xlu0 %v104, 127
    %v116 = vpop.permute.xlu0 %115
    %v118 = vadd.f32 %v103, %v116
    %120 = vrot.lane.b32.xlu0 %v106, 127
    %v121 = vpop.permute.xlu0 %120
    %v123 = vadd.f32 %v105, %v121
    %125 = vrot.lane.b32.xlu0 %v108, 127
    %v126 = vpop.permute.xlu0 %125
    %v128 = vadd.f32 %v107, %v126
    %v130 = vrot.slane %v118, 1
    %v132 = vadd.f32 %v113, %v130
    %v134 = vrot.slane %v128, 1
    %v136 = vadd.f32 %v123, %v134
    %v137 = vadd.f32 %v132, %v136
    %v138 = vadd.f32 %v137, 0.6248041
    %v139 = vmax.f32 %v138, 0.0
    %v140 = vmul.f32 %v41, -0.10776422
    %v141 = vmul.f32 %v41, -0.9026764
    %v142 = vmul.f32 %v41, 1.3759643
    %v143 = vmul.f32 %v41, 0.1301107
    %v144 = vmul.f32 %v61, -0.590046
    %v145 = vmul.f32 %v61, -0.46129552
    %v146 = vmul.f32 %v61, -0.5670999
    %v147 = vmul.f32 %v61, 0.27617192
    %149 = vrot.lane.b32.xlu0 %v141, 127
    %v150 = vpop.permute.xlu0 %149
    %v152 = vadd.f32 %v140, %v150
    %154 = vrot.lane.b32.xlu0 %v143, 127
    %v155 = vpop.permute.xlu0 %154
    %v157 = vadd.f32 %v142, %v155
    %159 = vrot.lane.b32.xlu0 %v145, 127
    %v160 = vpop.permute.xlu0 %159
    %v162 = vadd.f32 %v144, %v160
    %164 = vrot.lane.b32.xlu0 %v147, 127
    %v165 = vpop.permute.xlu0 %164
    %v167 = vadd.f32 %v146, %v165
    %v169 = vrot.slane %v157, 1
    %v171 = vadd.f32 %v152, %v169
    %v173 = vrot.slane %v167, 1
    %v175 = vadd.f32 %v162, %v173
    %v176 = vadd.f32 %v171, %v175
    %v177 = vadd.f32 %v176, 1.6820775
    %v178 = vmax.f32 %v177, 0.0
    %v179 = vmul.f32 %v21, -1.0208853
    %v180 = vmul.f32 %v21, 0.60980767
    %v181 = vmul.f32 %v21, -1.2941693
    %v182 = vmul.f32 %v21, -0.121447206
    %v183 = vmul.f32 %v21, -1.348548
    %v184 = vmul.f32 %v21, -0.69367766
    %v185 = vmul.f32 %v21, 0.79971975
    %v186 = vmul.f32 %v21, 1.6982158
    %v187 = vmul.f32 %v21, 0.42072576
    %189 = vrot.lane.b32.xlu0 %v180, 127
    %v190 = vpop.permute.xlu0 %189
    %v192 = vadd.f32 %v179, %v190
    %v194 = vrot.slane %v182, 1
    %195 = vrot.lane.b32.xlu0 %v194, 2
    %v196 = vpop.permute.xlu0 %195
    %v198 = vadd.f32 %v181, %v196
    %200 = vrot.lane.b32.xlu0 %v184, 127
    %v201 = vpop.permute.xlu0 %200
    %v203 = vadd.f32 %v183, %v201
    %205 = vrot.lane.b32.xlu0 %v186, 127
    %v206 = vpop.permute.xlu0 %205
    %v208 = vadd.f32 %v185, %v206
    %210 = vrot.lane.b32.xlu0 %v198, 126
    %v211 = vpop.permute.xlu0 %210
    %v213 = vadd.f32 %v192, %v211
    %v215 = vrot.slane %v208, 1
    %216 = vrot.lane.b32.xlu0 %v215, 1
    %v217 = vpop.permute.xlu0 %216
    %v219 = vadd.f32 %v203, %v217
    %v221 = vrot.slane %v219, 1
    %222 = vrot.lane.b32.xlu0 %v221, 127
    %v223 = vpop.permute.xlu0 %222
    %v225 = vadd.f32 %v213, %v223
    %v227 = vrot.slane %v187, 2
    %228 = vrot.lane.b32.xlu0 %v227, 126
    %v229 = vpop.permute.xlu0 %228
    %v231 = vadd.f32 %v225, %v229
    %v232 = vadd.f32 %v231, 0.63737714
    %v233 = vmax.f32 %v232, 0.0
    %v234 = vmul.f32 %v21, -0.2674089
    %v235 = vmul.f32 %v21, -0.6894747
    %v236 = vmul.f32 %v21, -1.3831555
    %v237 = vmul.f32 %v21, 0.7428611
    %v238 = vmul.f32 %v21, -0.44281256
    %v239 = vmul.f32 %v21, -0.9308274
    %v240 = vmul.f32 %v21, 1.3642888
    %v241 = vmul.f32 %v21, 1.169158
    %v242 = vmul.f32 %v21, 0.2968385
    %244 = vrot.lane.b32.xlu0 %v235, 127
    %v245 = vpop.permute.xlu0 %244
    %v247 = vadd.f32 %v234, %v245
    %v249 = vrot.slane %v237, 1
    %250 = vrot.lane.b32.xlu0 %v249, 2
    %v251 = vpop.permute.xlu0 %250
    %v253 = vadd.f32 %v236, %v251
    %255 = vrot.lane.b32.xlu0 %v239, 127
    %v256 = vpop.permute.xlu0 %255
    %v258 = vadd.f32 %v238, %v256
    %260 = vrot.lane.b32.xlu0 %v241, 127
    %v261 = vpop.permute.xlu0 %260
    %v263 = vadd.f32 %v240, %v261
    %265 = vrot.lane.b32.xlu0 %v253, 126
    %v266 = vpop.permute.xlu0 %265
    %v268 = vadd.f32 %v247, %v266
    %v270 = vrot.slane %v263, 1
    %271 = vrot.lane.b32.xlu0 %v270, 1
    %v272 = vpop.permute.xlu0 %271
    %v274 = vadd.f32 %v258, %v272
    %v276 = vrot.slane %v274, 1
    %277 = vrot.lane.b32.xlu0 %v276, 127
    %v278 = vpop.permute.xlu0 %277
    %v280 = vadd.f32 %v268, %v278
    %v282 = vrot.slane %v242, 2
    %283 = vrot.lane.b32.xlu0 %v282, 126
    %v284 = vpop.permute.xlu0 %283
    %v286 = vadd.f32 %v280, %v284
    %v287 = vadd.f32 %v286, 0.31959155
    %v288 = vmax.f32 %v287, 0.0
    %v289 = vmul.f32 %v233, 1.1634994
    %v290 = vmul.f32 %v288, -0.97057396
    %v291 = vadd.f32 %v289, %v290
    %v292 = vadd.f32 %v291, -0.06259047
    %v293 = vmax.f32 %v292, 0.0
    %v294 = vmul.f32 %v233, 0.25754312
    %v295 = vmul.f32 %v288, 0.5350835
    %v296 = vadd.f32 %v294, %v295
    %v297 = vadd.f32 %v296, -1.4614409
    %v298 = vmax.f32 %v297, 0.0
    %v299 = vmul.f32 %v233, 0.6336191
    %v300 = vmul.f32 %v288, -0.60217035
    %v301 = vadd.f32 %v299, %v300
    %v302 = vadd.f32 %v301, -0.8937471
    %v303 = vmax.f32 %v302, 0.0
    %v305 = vrot.slane %v293, 6
    %vm307 = vcmask 1041408
    %v308 = vsel %vm307, %v100, %v305
    %v310 = vrot.slane %v298, 6
    %v312 = vsel %vm307, %v139, %v310
    %v314 = vrot.slane %v303, 6
    %v316 = vsel %vm307, %v178, %v314
    %v317 = vmul.f32 %v308, -0.6458575
    %v318 = vmul.f32 %v308, -1.5269912
    %v319 = vmul.f32 %v308, 0.63897675
    %v320 = vmul.f32 %v308, -2.8942063
    %v321 = vmul.f32 %v312, -1.2808201
    %v322 = vmul.f32 %v312, -0.37994152
    %v323 = vmul.f32 %v312, 0.84498125
    %v324 = vmul.f32 %v312, 0.14399649
    %v325 = vmul.f32 %v316, -0.20779051
    %v326 = vmul.f32 %v316, -0.38744795
    %v327 = vmul.f32 %v316, -0.9616397
    %v328 = vmul.f32 %v316, -0.71521777
    %330 = vrot.lane.b32.xlu0 %v318, 127
    %v331 = vpop.permute.xlu0 %330
    %v333 = vadd.f32 %v317, %v331
    %335 = vrot.lane.b32.xlu0 %v320, 127
    %v336 = vpop.permute.xlu0 %335
    %v338 = vadd.f32 %v319, %v336
    %340 = vrot.lane.b32.xlu0 %v322, 127
    %v341 = vpop.permute.xlu0 %340
    %v343 = vadd.f32 %v321, %v341
    %345 = vrot.lane.b32.xlu0 %v324, 127
    %v346 = vpop.permute.xlu0 %345
    %v348 = vadd.f32 %v323, %v346
    %350 = vrot.lane.b32.xlu0 %v326, 127
    %v351 = vpop.permute.xlu0 %350
    %v353 = vadd.f32 %v325, %v351
    %355 = vrot.lane.b32.xlu0 %v328, 127
    %v356 = vpop.permute.xlu0 %355
    %v358 = vadd.f32 %v327, %v356
    %v360 = vrot.slane %v338, 1
    %v362 = vadd.f32 %v333, %v360
    %v364 = vrot.slane %v348, 1
    %v366 = vadd.f32 %v343, %v364
    %v368 = vrot.slane %v358, 1
    %v370 = vadd.f32 %v353, %v368
    %v371 = vadd.f32 %v362, %v366
    %v372 = vadd.f32 %v371, %v370
    %v373 = vadd.f32 %v372, 0.07209862
    %v374 = vmul.f32 %v308, 2.0818694
    %v375 = vmul.f32 %v308, -0.26118493
    %v376 = vmul.f32 %v308, -0.56266606
    %v377 = vmul.f32 %v308, 1.1899151
    %v378 = vmul.f32 %v312, -0.7588574
    %v379 = vmul.f32 %v312, -0.4992838
    %v380 = vmul.f32 %v312, -0.59703183
    %v381 = vmul.f32 %v312, -0.8530384
    %v382 = vmul.f32 %v316, 0.25516477
    %v383 = vmul.f32 %v316, 0.40848747
    %v384 = vmul.f32 %v316, -0.12627798
    %v385 = vmul.f32 %v316, -0.034815423
    %387 = vrot.lane.b32.xlu0 %v375, 127
    %v388 = vpop.permute.xlu0 %387
    %v390 = vadd.f32 %v374, %v388
    %392 = vrot.lane.b32.xlu0 %v377, 127
    %v393 = vpop.permute.xlu0 %392
    %v395 = vadd.f32 %v376, %v393
    %397 = vrot.lane.b32.xlu0 %v379, 127
    %v398 = vpop.permute.xlu0 %397
    %v400 = vadd.f32 %v378, %v398
    %402 = vrot.lane.b32.xlu0 %v381, 127
    %v403 = vpop.permute.xlu0 %402
    %v405 = vadd.f32 %v380, %v403
    %407 = vrot.lane.b32.xlu0 %v383, 127
    %v408 = vpop.permute.xlu0 %407
    %v410 = vadd.f32 %v382, %v408
    %412 = vrot.lane.b32.xlu0 %v385, 127
    %v413 = vpop.permute.xlu0 %412
    %v415 = vadd.f32 %v384, %v413
    %v417 = vrot.slane %v395, 1
    %v419 = vadd.f32 %v390, %v417
    %v421 = vrot.slane %v405, 1
    %v423 = vadd.f32 %v400, %v421
    %v425 = vrot.slane %v415, 1
    %v427 = vadd.f32 %v410, %v425
    %v428 = vadd.f32 %v419, %v423
    %v429 = vadd.f32 %v428, %v427
    %v430 = vadd.f32 %v429, -0.29517967
    %432 = vrot.lane.b32.xlu0 %v430, 1
    %v433 = vpop.permute.xlu0 %432
    %vm435 = vcmask 7168
    %v436 = vsel %vm435, %v373, %v433
    %vm437 = vcmask 8192
    %438 = vst.msk [vmem:[#allocation5] sm:$0x1] %vm437, %v436
    %vm439 = vcmask 10242
    %440 = vst.msk [vmem:[#allocation5 - $0x1] sm:$0x4] %vm439, %v436
    // Predicated region
    $region10: #{forward.1} parent=1 // pred_check
      _
    $region11: #{forward.1} parent=1 // pred_check_branch
      %442 = sbr.rel (0) target = $region13
    $region12: #{forward.1} parent=1 // pred_region
      %s444 = ssub.s32 32, 32
      %445 = vsyncadd [#allocation4], %s444
      %s447 = sshll.u32 [#allocation5], 4
      %s448 = int_to_ptr.vmem [resolvable:$true] %s447
      %450 = dma.vmem_to_hbm [thread:$0]  %s448, 32, %s1, [#allocation4]
    $region13: #{forward.1} parent=1 // pred_fallthru
      _
    // Predicated region
    $region14: #{forward.1} parent=1 // pred_check
      _
    $region15: #{forward.1} parent=1 // pred_check_branch
      %452 = sbr.rel (0) target = $region17
    $region16: #{forward.1} parent=1 // pred_region
      %453 = dma.done [#allocation4], 32
    $region17: #{forward.1} parent=1 // pred_fallthru
      _
    %454 = vsyncpa [#allocation3], 1
    %455 = vsyncpa [#allocation4], 1

</llo_original>
